<compile_context>
chip_gen: v6e
topology: v6e:2x2x1
jax: 0.10.0
libtpu: 0.0.40
codegen_flags: <defaults>
</compile_context>

<pallas_src>
import functools

import jax
import jax.numpy as jnp
from jax import lax
from jax.experimental import pallas as pl
from jax.experimental.pallas import tpu as pltpu


def _round_up(n, m):
    return ((n + m - 1) // m) * m


def _circle_loss_kernel(x_ref, w_ref, lbl_col_ref, lbl_row_ref, loss_ref,
                        xn_ref, sim_ref, *, margin, gamma, batch, mm_dtype):
    k = pl.program_id(0)

    @pl.when(k == 0)
    def _init():
        # F.normalize(x, p=2, dim=1, eps=1e-12): x / max(||x||_2, 1e-12), in f32.
        x = x_ref[...].astype(jnp.float32)
        norm = jnp.sqrt(jnp.sum(x * x, axis=-1, keepdims=True))
        xn_ref[...] = (x / jnp.maximum(norm, 1e-12)).astype(xn_ref.dtype)
        sim_ref[...] = jnp.zeros_like(sim_ref)

    # Normalize the current class-weight chunk (rows independent -> chunkwise exact).
    w = w_ref[...].astype(jnp.float32)
    wnorm = jnp.sqrt(jnp.sum(w * w, axis=-1, keepdims=True))
    wn = (w / jnp.maximum(wnorm, 1e-12)).astype(mm_dtype)

    # logits_chunk = x_n @ w_chunk_n.T  -> (B, tc)   (MXU, f32 accumulation)
    logits = lax.dot_general(xn_ref[...], wn, (((1,), (1,)), ((), ())),
                             preferred_element_type=jnp.float32)
    lg = logits.astype(mm_dtype)
    # Partial similarity: sim += logits_chunk @ logits_chunk.T  -> (B, B)
    sim_ref[...] += lax.dot_general(lg, lg, (((1,), (1,)), ((), ())),
                                    preferred_element_type=jnp.float32)

    @pl.when(k == pl.num_programs(0) - 1)
    def _finalize():
        sim = sim_ref[...]
        bp = sim.shape[0]
        neg_inf = jnp.float32(-jnp.inf)

        label_eq = lbl_col_ref[...] == lbl_row_ref[...]            # (B, B)
        row_ids = lax.broadcasted_iota(jnp.int32, (bp, bp), 0)
        col_ids = lax.broadcasted_iota(jnp.int32, (bp, bp), 1)
        keep = jnp.logical_and(col_ids > row_ids,                  # triu(diagonal=1)
                               jnp.logical_and(row_ids < batch, col_ids < batch))
        pos_mask = jnp.logical_and(label_eq, keep)
        neg_mask = jnp.logical_and(jnp.logical_not(label_eq), keep)

        m = jnp.float32(margin)
        g = jnp.float32(gamma)
        ap = jnp.maximum(-sim + 1.0 + m, 0.0)       # clamp_min(-sp + 1 + m, 0)
        an = jnp.maximum(sim + m, 0.0)              # clamp_min(sn + m, 0)
        logit_p = -ap * (sim - (1.0 - m)) * g       # delta_p = 1 - m
        logit_n = an * (sim - m) * g                # delta_n = m

        lp = jnp.where(pos_mask, logit_p, neg_inf)
        ln = jnp.where(neg_mask, logit_n, neg_inf)

        def lse(z):
            # Lane-axis (cheap XLU) reduction first, then combine across sublanes.
            row_max = jnp.max(z, axis=-1, keepdims=True)
            gmax = jnp.max(row_max)
            safe = jnp.where(gmax == neg_inf, jnp.float32(0.0), gmax)
            row_sum = jnp.sum(jnp.exp(z - safe), axis=-1, keepdims=True)
            total = jnp.sum(row_sum)
            return jnp.where(gmax == neg_inf, neg_inf, jnp.log(total) + safe)

        tot = lse(ln) + lse(lp)
        # softplus(x) = max(x, 0) + log1p(exp(-|x|));  softplus(-inf) = 0 (matches torch)
        loss_ref[0, 0] = jnp.maximum(tot, 0.0) + jnp.log1p(jnp.exp(-jnp.abs(tot)))


def _pick_class_tile(B_pad, E_pad, C, w_itemsize, x_itemsize, vmem_limit_bytes):
    """Largest 256-multiple class tile that keeps the per-step working set in budget."""
    # fixed: x block + normalized-x scratch + (B,B) f32 accumulator + epilogue temps + slack
    fixed = B_pad * E_pad * (x_itemsize + 4 + 2) + B_pad * B_pad * 4 * 4 + (1 << 20)
    # per weight row: double-buffered weight chunk + f32/bf16 normalization temporaries
    #                 + one column of the f32/bf16 logits chunk
    per_row = E_pad * (2 * w_itemsize + 4 + 4 + 2) + B_pad * (4 + 2)
    budget = int(0.6 * vmem_limit_bytes)
    tc = (max(budget - fixed, 0) // per_row // 256) * 256
    tc = max(256, min(int(tc), 2048))          # multiple of 256 (MXU-friendly), capped
    tc = min(tc, _round_up(C, 256))            # never exceed the (padded) class count
    return tc


def circle_loss(x, weight, labels, *, margin=0.25, gamma=64.0,
                class_tile=None, vmem_limit_bytes=48 * 1024 * 1024,
                use_bf16_matmul=True):
    """CircleLoss forward. x: (B, E) float, weight: (C, E) float, labels: (B,) int."""
    B, E = x.shape
    C, E2 = weight.shape
    assert E == E2, "embedding_size mismatch"

    B_pad = _round_up(max(B, 8), 8)
    E_pad = _round_up(max(E, 128), 128)
    w_item = jnp.dtype(weight.dtype).itemsize
    x_item = jnp.dtype(x.dtype).itemsize

    tc = int(class_tile) if class_tile is not None else _pick_class_tile(
        B_pad, E_pad, C, w_item, x_item, vmem_limit_bytes)
    C_pad = _round_up(C, tc)
    n_ct = C_pad // tc

    # Zero padding is exact (zero rows normalize to 0); padded batch rows are masked.
    xp = x
    if (B_pad, E_pad) != (B, E):
        xp = jnp.zeros((B_pad, E_pad), x.dtype).at[:B, :E].set(x)
    wp = weight
    if (C_pad, E_pad) != (C, E):
        wp = jnp.zeros((C_pad, E_pad), weight.dtype).at[:C, :E].set(weight)
    lbl = jnp.full((B_pad,), -1, jnp.int32).at[:B].set(labels.astype(jnp.int32))
    lbl_col = lbl.reshape(B_pad, 1)
    lbl_row = lbl.reshape(1, B_pad)

    mm_dtype = jnp.bfloat16 if use_bf16_matmul else jnp.float32
    kernel = functools.partial(_circle_loss_kernel, margin=float(margin),
                               gamma=float(gamma), batch=B, mm_dtype=mm_dtype)

    cost = pl.CostEstimate(
        flops=2 * B_pad * C_pad * E_pad + 2 * B_pad * B_pad * C_pad,
        transcendentals=2 * B_pad * B_pad,
        bytes_accessed=C_pad * E_pad * w_item + B_pad * E_pad * x_item + 4)

    out = pl.pallas_call(
        kernel,
        out_shape=jax.ShapeDtypeStruct((1, 1), jnp.float32),
        grid_spec=pltpu.PrefetchScalarGridSpec(
            num_scalar_prefetch=0,
            grid=(n_ct,),
            in_specs=[
                pl.BlockSpec((B_pad, E_pad), lambda k: (0, 0)),   # x (VMEM-resident)
                pl.BlockSpec((tc, E_pad), lambda k: (k, 0)),      # weight chunk stream
                pl.BlockSpec((B_pad, 1), lambda k: (0, 0)),       # labels as column
                pl.BlockSpec((1, B_pad), lambda k: (0, 0)),       # labels as row
            ],
            out_specs=pl.BlockSpec((1, 1), lambda k: (0, 0),
                                   memory_space=pltpu.MemorySpace.SMEM),
            scratch_shapes=[
                pltpu.VMEM((B_pad, E_pad), mm_dtype),             # normalized x
                pltpu.VMEM((B_pad, B_pad), jnp.float32),          # sim accumulator
            ],
        ),
        compiler_params=pltpu.CompilerParams(
            dimension_semantics=("arbitrary",),
            vmem_limit_bytes=int(vmem_limit_bytes)),
        cost_estimate=cost,
    )(xp, wp, lbl_col, lbl_row)
    return out[0, 0]


# TODO(synk): v7x dual-TensorCore split of the C reduction (partial sims combined via a
# second tiny pallas_call) is not implemented; single-core grid only.


if __name__ == "__main__":
    # Small, deterministic config: batch=8, embedding_size=32, num_classes=16.
    B, E, C = 8, 32, 16
    margin, gamma = 0.25, 64.0

    key = jax.random.PRNGKey(0)
    k_x, k_w, k_l = jax.random.split(key, 3)

    x = jax.random.normal(k_x, (B, E), dtype=jnp.float32)             # embeddings
    weight = 0.01 * jax.random.normal(k_w, (C, E), dtype=jnp.float32)  # class weights
    labels = jax.random.randint(k_l, (B,), 0, C, dtype=jnp.int32)

    loss = circle_loss(x, weight, labels, margin=margin, gamma=gamma)
    jax.block_until_ready(loss)
    print("KERNEL_OK")
</pallas_src>

<mosaic_0001>
module attributes {stable_mosaic.version = 11 : i64} {
  func.func @_circle_loss_kernel(%arg0: i32, %arg1: memref<8x128xf32, #tpu.memory_space<vmem>>, %arg2: memref<256x128xf32, #tpu.memory_space<vmem>>, %arg3: memref<8x1xi32, #tpu.memory_space<vmem>>, %arg4: memref<1x8xi32, #tpu.memory_space<vmem>>, %arg5: memref<1x1xf32, #tpu.memory_space<smem>>, %arg6: memref<8x128xbf16, #tpu.memory_space<vmem>>, %arg7: memref<8x8xf32, #tpu.memory_space<vmem>>) attributes {dimension_semantics = [#tpu.dimension_semantics<arbitrary>], iteration_bounds = array<i64: 1>, scalar_prefetch = 0 : i64, scratch_operands = 2 : i64, tpu.core_type = #tpu.core_type<tc>, window_params = [{pipeline_mode = #tpu.pipeline_mode<synchronous>, transform_indices = @transform_0, window_bounds = array<i64: 8, 128>}, {transform_indices = @transform_1, window_bounds = array<i64: 256, 128>}, {pipeline_mode = #tpu.pipeline_mode<synchronous>, transform_indices = @transform_2, window_bounds = array<i64: 8, 1>}, {pipeline_mode = #tpu.pipeline_mode<synchronous>, transform_indices = @transform_3, window_bounds = array<i64: 1, 8>}, {transform_indices = @transform_4, window_bounds = array<i64: 1, 1>}]} {
    %c0_i32 = arith.constant 0 : i32
    %0 = arith.cmpi eq, %arg0, %c0_i32 : i32
    %1 = arith.extui %0 : i1 to i32
    %c0_i32_0 = arith.constant 0 : i32
    %2 = arith.cmpi ne, %1, %c0_i32_0 : i32
    scf.if %2 {
      %c0_13 = arith.constant 0 : index
      %c0_14 = arith.constant 0 : index
      %23 = vector.load %arg1[%c0_13, %c0_14] : memref<8x128xf32, #tpu.memory_space<vmem>>, vector<8x128xf32>
      %24 = arith.mulf %23, %23 : vector<8x128xf32>
      %cst_15 = arith.constant dense<0.000000e+00> : vector<8xf32>
      %25 = vector.multi_reduction <add>, %24, %cst_15 [1] : vector<8x128xf32> to vector<8xf32>
      %26 = vector.shape_cast %25 : vector<8xf32> to vector<8x1xf32>
      %27 = math.sqrt %26 : vector<8x1xf32>
      %cst_16 = arith.constant 9.99999996E-13 : f32
      %28 = vector.broadcast %cst_16 : f32 to vector<8x1xf32>
      %29 = arith.maximumf %27, %28 : vector<8x1xf32>
      %30 = vector.broadcast %29 : vector<8x1xf32> to vector<8x128xf32>
      %31 = arith.divf %23, %30 : vector<8x128xf32>
      %32 = arith.truncf %31 : vector<8x128xf32> to vector<8x128xbf16>
      %c0_17 = arith.constant 0 : index
      %c0_18 = arith.constant 0 : index
      %33 = vector.load %arg6[%c0_17, %c0_18] : memref<8x128xbf16, #tpu.memory_space<vmem>>, vector<8x128xbf16>
      tpu.vector_store %arg6[%c0_17, %c0_18], %32 {strides = array<i32>} : memref<8x128xbf16, #tpu.memory_space<vmem>>, vector<8x128xbf16>,
      %cst_19 = arith.constant 0.000000e+00 : f32
      %34 = vector.broadcast %cst_19 : f32 to vector<8x8xf32>
      %c0_20 = arith.constant 0 : index
      %c0_21 = arith.constant 0 : index
      %35 = vector.load %arg7[%c0_20, %c0_21] : memref<8x8xf32, #tpu.memory_space<vmem>>, vector<8x8xf32>
      tpu.vector_store %arg7[%c0_20, %c0_21], %34 {strides = array<i32>} : memref<8x8xf32, #tpu.memory_space<vmem>>, vector<8x8xf32>,
    } else {
    }
    %c0 = arith.constant 0 : index
    %c0_1 = arith.constant 0 : index
    %3 = vector.load %arg2[%c0, %c0_1] : memref<256x128xf32, #tpu.memory_space<vmem>>, vector<256x128xf32>
    %4 = arith.mulf %3, %3 : vector<256x128xf32>
    %cst = arith.constant dense<0.000000e+00> : vector<256xf32>
    %5 = vector.multi_reduction <add>, %4, %cst [1] : vector<256x128xf32> to vector<256xf32>
    %6 = vector.shape_cast %5 : vector<256xf32> to vector<256x1xf32>
    %7 = math.sqrt %6 : vector<256x1xf32>
    %cst_2 = arith.constant 9.99999996E-13 : f32
    %8 = vector.broadcast %cst_2 : f32 to vector<256x1xf32>
    %9 = arith.maximumf %7, %8 : vector<256x1xf32>
    %10 = vector.broadcast %9 : vector<256x1xf32> to vector<256x128xf32>
    %11 = arith.divf %3, %10 : vector<256x128xf32>
    %12 = arith.truncf %11 : vector<256x128xf32> to vector<256x128xbf16>
    %c0_3 = arith.constant 0 : index
    %c0_4 = arith.constant 0 : index
    %13 = vector.load %arg6[%c0_3, %c0_4] : memref<8x128xbf16, #tpu.memory_space<vmem>>, vector<8x128xbf16>
    %cst_5 = arith.constant dense<0.000000e+00> : vector<8x256xf32>
    %14 = tpu.matmul %13, %12, %cst_5 {dimension_numbers = #tpu.dot_dimension_numbers<[1], [1], [0], [0], [0, 0, 1, 0], [], []>} : vector<8x128xbf16>, vector<256x128xbf16>, vector<8x256xf32> -> vector<8x256xf32>
    %15 = arith.truncf %14 : vector<8x256xf32> to vector<8x256xbf16>
    %c0_6 = arith.constant 0 : index
    %c0_7 = arith.constant 0 : index
    %16 = vector.load %arg7[%c0_6, %c0_7] : memref<8x8xf32, #tpu.memory_space<vmem>>, vector<8x8xf32>
    %cst_8 = arith.constant dense<0.000000e+00> : vector<8x8xf32>
    %17 = tpu.matmul %15, %15, %cst_8 {dimension_numbers = #tpu.dot_dimension_numbers<[1], [1], [0], [0], [0, 0, 1, 0], [], []>} : vector<8x256xbf16>, vector<8x256xbf16>, vector<8x8xf32> -> vector<8x8xf32>
    %18 = arith.addf %16, %17 : vector<8x8xf32>
    %c0_9 = arith.constant 0 : index
    %c0_10 = arith.constant 0 : index
    %19 = vector.load %arg7[%c0_9, %c0_10] : memref<8x8xf32, #tpu.memory_space<vmem>>, vector<8x8xf32>
    tpu.vector_store %arg7[%c0_9, %c0_10], %18 {strides = array<i32>} : memref<8x8xf32, #tpu.memory_space<vmem>>, vector<8x8xf32>,
    %c0_i32_11 = arith.constant 0 : i32
    %20 = arith.cmpi eq, %arg0, %c0_i32_11 : i32
    %21 = arith.extui %20 : i1 to i32
    %c0_i32_12 = arith.constant 0 : i32
    %22 = arith.cmpi ne, %21, %c0_i32_12 : i32
    scf.if %22 {
      %c0_13 = arith.constant 0 : index
      %c0_14 = arith.constant 0 : index
      %23 = vector.load %arg7[%c0_13, %c0_14] : memref<8x8xf32, #tpu.memory_space<vmem>>, vector<8x8xf32>
      %c0_15 = arith.constant 0 : index
      %c0_16 = arith.constant 0 : index
      %24 = vector.load %arg3[%c0_15, %c0_16] : memref<8x1xi32, #tpu.memory_space<vmem>>, vector<8x1xi32>
      %c0_17 = arith.constant 0 : index
      %c0_18 = arith.constant 0 : index
      %25 = vector.load %arg4[%c0_17, %c0_18] : memref<1x8xi32, #tpu.memory_space<vmem>>, vector<1x8xi32>
      %26 = vector.broadcast %24 : vector<8x1xi32> to vector<8x8xi32>
      %27 = vector.broadcast %25 : vector<1x8xi32> to vector<8x8xi32>
      %28 = arith.cmpi eq, %26, %27 : vector<8x8xi32>
      %29 = tpu.iota {dimensions = array<i32: 0>} : vector<8x8xi32>
      %30 = tpu.iota {dimensions = array<i32: 1>} : vector<8x8xi32>
      %31 = arith.cmpi sgt, %30, %29 : vector<8x8xi32>
      %c8_i32 = arith.constant 8 : i32
      %32 = vector.broadcast %c8_i32 : i32 to vector<8x8xi32>
      %33 = arith.cmpi slt, %29, %32 : vector<8x8xi32>
      %c8_i32_19 = arith.constant 8 : i32
      %34 = vector.broadcast %c8_i32_19 : i32 to vector<8x8xi32>
      %35 = arith.cmpi slt, %30, %34 : vector<8x8xi32>
      %36 = arith.andi %33, %35 : vector<8x8xi1>
      %37 = arith.andi %31, %36 : vector<8x8xi1>
      %38 = arith.andi %28, %37 : vector<8x8xi1>
      %cst_20 = arith.constant dense<true> : vector<8x8xi1>
      %39 = arith.xori %28, %cst_20 : vector<8x8xi1>
      %40 = arith.andi %39, %37 : vector<8x8xi1>
      %cst_21 = arith.constant 0.000000e+00 : f32
      %41 = vector.broadcast %cst_21 : f32 to vector<8x8xf32>
      %42 = arith.subf %41, %23 : vector<8x8xf32>
      %cst_22 = arith.constant 1.000000e+00 : f32
      %43 = vector.broadcast %cst_22 : f32 to vector<8x8xf32>
      %44 = arith.addf %42, %43 : vector<8x8xf32>
      %cst_23 = arith.constant 2.500000e-01 : f32
      %45 = vector.broadcast %cst_23 : f32 to vector<8x8xf32>
      %46 = arith.addf %44, %45 : vector<8x8xf32>
      %cst_24 = arith.constant 0.000000e+00 : f32
      %47 = vector.broadcast %cst_24 : f32 to vector<8x8xf32>
      %48 = arith.maximumf %46, %47 : vector<8x8xf32>
      %cst_25 = arith.constant 2.500000e-01 : f32
      %49 = vector.broadcast %cst_25 : f32 to vector<8x8xf32>
      %50 = arith.addf %23, %49 : vector<8x8xf32>
      %cst_26 = arith.constant 0.000000e+00 : f32
      %51 = vector.broadcast %cst_26 : f32 to vector<8x8xf32>
      %52 = arith.maximumf %50, %51 : vector<8x8xf32>
      %cst_27 = arith.constant 0.000000e+00 : f32
      %53 = vector.broadcast %cst_27 : f32 to vector<8x8xf32>
      %54 = arith.subf %53, %48 : vector<8x8xf32>
      %cst_28 = arith.constant 1.000000e+00 : f32
      %cst_29 = arith.constant 2.500000e-01 : f32
      %55 = arith.subf %cst_28, %cst_29 : f32
      %56 = vector.broadcast %55 : f32 to vector<8x8xf32>
      %57 = arith.subf %23, %56 : vector<8x8xf32>
      %58 = arith.mulf %54, %57 : vector<8x8xf32>
      %cst_30 = arith.constant 6.400000e+01 : f32
      %59 = vector.broadcast %cst_30 : f32 to vector<8x8xf32>
      %60 = arith.mulf %58, %59 : vector<8x8xf32>
      %cst_31 = arith.constant 2.500000e-01 : f32
      %61 = vector.broadcast %cst_31 : f32 to vector<8x8xf32>
      %62 = arith.subf %23, %61 : vector<8x8xf32>
      %63 = arith.mulf %52, %62 : vector<8x8xf32>
      %cst_32 = arith.constant 6.400000e+01 : f32
      %64 = vector.broadcast %cst_32 : f32 to vector<8x8xf32>
      %65 = arith.mulf %63, %64 : vector<8x8xf32>
      %cst_33 = arith.constant 0xFF800000 : f32
      %66 = vector.broadcast %cst_33 : f32 to vector<8x8xf32>
      %67 = arith.select %38, %60, %66 : vector<8x8xi1>, vector<8x8xf32>
      %cst_34 = arith.constant 0xFF800000 : f32
      %68 = vector.broadcast %cst_34 : f32 to vector<8x8xf32>
      %69 = arith.select %40, %65, %68 : vector<8x8xi1>, vector<8x8xf32>
      %cst_35 = arith.constant dense<0xFF800000> : vector<8xf32>
      %70 = vector.multi_reduction <maximumf>, %69, %cst_35 [1] : vector<8x8xf32> to vector<8xf32>
      %71 = vector.shape_cast %70 : vector<8xf32> to vector<8x1xf32>
      %72 = vector.shape_cast %71 : vector<8x1xf32> to vector<1x8x1xf32>
      %cst_36 = arith.constant dense<0xFF800000> : vector<1xf32>
      %73 = vector.multi_reduction <maximumf>, %72, %cst_36 [1, 2] : vector<1x8x1xf32> to vector<1xf32>
      %74 = vector.shape_cast %73 : vector<1xf32> to vector<1x1x1xf32>
      %75 = vector.extract %74[0, 0, 0] : f32 from vector<1x1x1xf32>
      %cst_37 = arith.constant 0xFF800000 : f32
      %76 = arith.cmpf oeq, %75, %cst_37 : f32
      %cst_38 = arith.constant 0.000000e+00 : f32
      %77 = arith.select %76, %cst_38, %75 : f32
      %78 = vector.broadcast %77 : f32 to vector<8x8xf32>
      %79 = arith.subf %69, %78 : vector<8x8xf32>
      %80 = math.exp %79 : vector<8x8xf32>
      %cst_39 = arith.constant dense<0.000000e+00> : vector<8xf32>
      %81 = vector.multi_reduction <add>, %80, %cst_39 [1] : vector<8x8xf32> to vector<8xf32>
      %82 = vector.shape_cast %81 : vector<8xf32> to vector<8x1xf32>
      %83 = vector.shape_cast %82 : vector<8x1xf32> to vector<1x8x1xf32>
      %cst_40 = arith.constant dense<0.000000e+00> : vector<1xf32>
      %84 = vector.multi_reduction <add>, %83, %cst_40 [1, 2] : vector<1x8x1xf32> to vector<1xf32>
      %85 = vector.shape_cast %84 : vector<1xf32> to vector<1x1x1xf32>
      %86 = vector.extract %85[0, 0, 0] : f32 from vector<1x1x1xf32>
      %cst_41 = arith.constant 0xFF800000 : f32
      %87 = arith.cmpf oeq, %75, %cst_41 : f32
      %88 = math.log %86 : f32
      %89 = arith.addf %88, %77 : f32
      %cst_42 = arith.constant 0xFF800000 : f32
      %90 = arith.select %87, %cst_42, %89 : f32
      %cst_43 = arith.constant dense<0xFF800000> : vector<8xf32>
      %91 = vector.multi_reduction <maximumf>, %67, %cst_43 [1] : vector<8x8xf32> to vector<8xf32>
      %92 = vector.shape_cast %91 : vector<8xf32> to vector<8x1xf32>
      %93 = vector.shape_cast %92 : vector<8x1xf32> to vector<1x8x1xf32>
      %cst_44 = arith.constant dense<0xFF800000> : vector<1xf32>
      %94 = vector.multi_reduction <maximumf>, %93, %cst_44 [1, 2] : vector<1x8x1xf32> to vector<1xf32>
      %95 = vector.shape_cast %94 : vector<1xf32> to vector<1x1x1xf32>
      %96 = vector.extract %95[0, 0, 0] : f32 from vector<1x1x1xf32>
      %cst_45 = arith.constant 0xFF800000 : f32
      %97 = arith.cmpf oeq, %96, %cst_45 : f32
      %cst_46 = arith.constant 0.000000e+00 : f32
      %98 = arith.select %97, %cst_46, %96 : f32
      %99 = vector.broadcast %98 : f32 to vector<8x8xf32>
      %100 = arith.subf %67, %99 : vector<8x8xf32>
      %101 = math.exp %100 : vector<8x8xf32>
      %cst_47 = arith.constant dense<0.000000e+00> : vector<8xf32>
      %102 = vector.multi_reduction <add>, %101, %cst_47 [1] : vector<8x8xf32> to vector<8xf32>
      %103 = vector.shape_cast %102 : vector<8xf32> to vector<8x1xf32>
      %104 = vector.shape_cast %103 : vector<8x1xf32> to vector<1x8x1xf32>
      %cst_48 = arith.constant dense<0.000000e+00> : vector<1xf32>
      %105 = vector.multi_reduction <add>, %104, %cst_48 [1, 2] : vector<1x8x1xf32> to vector<1xf32>
      %106 = vector.shape_cast %105 : vector<1xf32> to vector<1x1x1xf32>
      %107 = vector.extract %106[0, 0, 0] : f32 from vector<1x1x1xf32>
      %cst_49 = arith.constant 0xFF800000 : f32
      %108 = arith.cmpf oeq, %96, %cst_49 : f32
      %109 = math.log %107 : f32
      %110 = arith.addf %109, %98 : f32
      %cst_50 = arith.constant 0xFF800000 : f32
      %111 = arith.select %108, %cst_50, %110 : f32
      %112 = arith.addf %90, %111 : f32
      %cst_51 = arith.constant 0.000000e+00 : f32
      %113 = arith.maximumf %112, %cst_51 : f32
      %114 = math.absf %112 : f32
      %cst_52 = arith.constant 0.000000e+00 : f32
      %115 = arith.subf %cst_52, %114 : f32
      %116 = math.exp %115 : f32
      %117 = math.log1p %116 : f32
      %118 = arith.addf %113, %117 : f32
      %c0_53 = arith.constant 0 : index
      %c0_54 = arith.constant 0 : index
      %119 = memref.load %arg5[%c0_53, %c0_54] : memref<1x1xf32, #tpu.memory_space<smem>>
      memref.store %118, %arg5[%c0_53, %c0_54] : memref<1x1xf32, #tpu.memory_space<smem>>
    } else {
    }
    return
  }
  func.func @transform_0(%arg0: i32) -> (i32, i32) {
    %c0_i32 = arith.constant 0 : i32
    %c0_i32_0 = arith.constant 0 : i32
    %c0_i32_1 = arith.constant 0 : i32
    return %c0_i32, %c0_i32_0 : i32, i32
  }
  func.func @transform_1(%arg0: i32) -> (i32, i32) {
    %c0_i32 = arith.constant 0 : i32
    %c0_i32_0 = arith.constant 0 : i32
    return %arg0, %c0_i32 : i32, i32
  }
  func.func @transform_2(%arg0: i32) -> (i32, i32) {
    %c0_i32 = arith.constant 0 : i32
    %c0_i32_0 = arith.constant 0 : i32
    %c0_i32_1 = arith.constant 0 : i32
    return %c0_i32, %c0_i32_0 : i32, i32
  }
  func.func @transform_3(%arg0: i32) -> (i32, i32) {
    %c0_i32 = arith.constant 0 : i32
    %c0_i32_0 = arith.constant 0 : i32
    %c0_i32_1 = arith.constant 0 : i32
    return %c0_i32, %c0_i32_0 : i32, i32
  }
  func.func @transform_4(%arg0: i32) -> (i32, i32) {
    %c0_i32 = arith.constant 0 : i32
    %c0_i32_0 = arith.constant 0 : i32
    %c0_i32_1 = arith.constant 0 : i32
    return %c0_i32, %c0_i32_0 : i32, i32
  }
}

</mosaic_0001>

<llo_original>
// kernel: tpu_custom_call.1
$region0: #{tpu_custom_call.1}
  #allocation0 [shape = 'u32[]', space=smem, size = 0x4, offset = 0x4, fixed_abs, tag = 'smem constant byte address 0x4 - core index']
  #allocation1 [shape = 'u32[144,128]{1,0:T(1,128)}', space=vmem, size = 0x12000, scoped, tag = 'internal scratch']
  #allocation2 [shape = 'bf16[8,128]{1,0:T(8,128)(2,1)}', space=vmem, size = 0x800, scoped, tag = 'scratch operand']
  #allocation3 [shape = 'f32[8,8]{1,0:T(8,128)}', space=vmem, size = 0x1000, scoped, tag = 'scratch operand']
  %s0 = inlined_call_operand.vmem [shape: f32[8,128], index: 0, kind: input, shape index: {}]
  %s1 = inlined_call_operand.hbm [shape: f32[256,128], index: 1, kind: input, shape index: {}]
  %s2 = inlined_call_operand.vmem [shape: s32[8,1], index: 2, kind: input, shape index: {}]
  %s3 = inlined_call_operand.vmem [shape: s32[1,8], index: 3, kind: input, shape index: {}]
  %s4 = inlined_call_operand.hbm [shape: f32[1,1], index: 4, kind: output, shape index: {}]
  %s5 = sld [smem:[#allocation0]]
  $region38: #{tpu_custom_call.1} parent=0
    _
  %s7 = ssub.s32 1, %s5
  %s8 = scalar_select 0, %s7, %s5
  $region1: #{tpu_custom_call.1} parent=0
    #allocation4 [shape = 'u8[131072]{0}', space=vmem, size = 0x20000, scoped, tag = 'input window, operand 1, single buffered']
    #allocation5 [shape = 's32[1]{0}', space=sflag, size = 0x4, scoped, tag = 'scoped memory for tpu_custom_call.1']
    #allocation6 [shape = 's32[1]{0}', space=sflag, size = 0x4, scoped, tag = 'scoped memory for tpu_custom_call.1']
    #allocation7 [shape = 'u8[512]{0}', space=smem, size = 0x200, scoped, tag = 'output window, operand 0, single buffered']
    %9 = vsyncpa [#allocation5], 0
    %10 = vsyncpa [#allocation6], 0
    // Predicated region
    $region2: #{tpu_custom_call.1} parent=1 // pred_check
      _
    $region3: #{tpu_custom_call.1} parent=1 // pred_check_branch
      %12 = sbr.rel (0) target = $region5
    $region4: #{tpu_custom_call.1} parent=1 // pred_region
      _
    $region5: #{tpu_custom_call.1} parent=1 // pred_fallthru
      _
    // Predicated region
    $region6: #{tpu_custom_call.1} parent=1 // pred_check
      _
    $region7: #{tpu_custom_call.1} parent=1 // pred_check_branch
      %14 = sbr.rel (0) target = $region9
    $region8: #{tpu_custom_call.1} parent=1 // pred_region
      %s16 = ssub.s32 4096, 4096
      %17 = vsyncadd [#allocation5], %s16
      %s18 = sshll.u32 [#allocation4], 4
      %s19 = int_to_ptr.vmem [resolvable:$true] %s18
      %24 = dma.hbm_to_vmem [thread:$0]  %s1, 4096, %s19, [#allocation5], 128, 128, 8
    $region9: #{tpu_custom_call.1} parent=1 // pred_fallthru
      _
    // Predicated region
    $region10: #{tpu_custom_call.1} parent=1 // pred_check
      _
    $region11: #{tpu_custom_call.1} parent=1 // pred_check_branch
      %26 = sbr.rel (0) target = $region13
    $region12: #{tpu_custom_call.1} parent=1 // pred_region
      _
    $region13: #{tpu_custom_call.1} parent=1 // pred_fallthru
      _
    // Predicated region
    $region14: #{tpu_custom_call.1} parent=1 // pred_check
      _
    $region15: #{tpu_custom_call.1} parent=1 // pred_check_branch
      %28 = sbr.rel (0) target = $region17
    $region16: #{tpu_custom_call.1} parent=1 // pred_region
      _
    $region17: #{tpu_custom_call.1} parent=1 // pred_fallthru
      _
    // Predicated region
    $region18: #{tpu_custom_call.1} parent=1 // pred_check
      _
    $region19: #{tpu_custom_call.1} parent=1 // pred_check_branch
      %30 = sbr.rel (0) target = $region21
    $region20: #{tpu_custom_call.1} parent=1 // pred_region
      %31 = dma.done [#allocation5], 4096
    $region21: #{tpu_custom_call.1} parent=1 // pred_fallthru
      _
    %p33 = scmp.eq.s32.totalorder 0, 0
    // Predicated region
    $region22: #{tpu_custom_call.1} parent=1 // pred_check
      %p34 = pneg %p33
    $region23: #{tpu_custom_call.1} parent=1 // pred_check_branch
      %36 = sbr.rel (%p34) target = $region25
    $region24: #{tpu_custom_call.1} parent=1 // pred_region
      %v37 = vld [vmem:[%s0] sm:$0xff]
      %v38 = vmul.f32 %v37, %v37
      %39 = vadd.xlane.f32.xlu0 %v38
      %v40 = vpop.xlane.xlu0 %39
      %v41 = vrsqrt.pop %v40
      %v42 = vmul.f32 %v40, %v41
      %vm43 = vcmp.eq.f32.partialorder %v40, inf
      %v44 = vsel %vm43, %v40, %v42
      %vm45 = vcmp.eq.f32.partialorder %v40, 0.0
      %v46 = vand.u32 %v40, 2147483648
      %v47 = vsel %vm45, %v46, %v44
      %v48 = vmax.f32 %v47, 1e-12
      %v49 = vrcp.pop %v48
      %v50 = vmul.f32 %v37, %v49
      %v51 = vpack.c.bf16 %v50, %v50
      %52 = vst [vmem:[#allocation2] sm:$0xf] %v51
      %vm53 = vcmask 64512
      %54 = vst.msk [vmem:[#allocation3] sm:$0xff] %vm53, 0.0
    $region25: #{tpu_custom_call.1} parent=1 // pred_fallthru
      _
    %v55 = vld [vmem:[#allocation4] sm:$0xff]
    %v56 = vld [vmem:[#allocation4 + $0x8] sm:$0xff]
    %v57 = vld [vmem:[#allocation4 + $0x10] sm:$0xff]
    %v58 = vld [vmem:[#allocation4 + $0x18] sm:$0xff]
    %v59 = vld [vmem:[#allocation4 + $0x20] sm:$0xff]
    %v60 = vld [vmem:[#allocation4 + $0x28] sm:$0xff]
    %v61 = vld [vmem:[#allocation4 + $0x30] sm:$0xff]
    %v62 = vld [vmem:[#allocation4 + $0x38] sm:$0xff]
    %v63 = vld [vmem:[#allocation4 + $0x40] sm:$0xff]
    %v64 = vld [vmem:[#allocation4 + $0x48] sm:$0xff]
    %v65 = vld [vmem:[#allocation4 + $0x50] sm:$0xff]
    %v66 = vld [vmem:[#allocation4 + $0x58] sm:$0xff]
    %v67 = vld [vmem:[#allocation4 + $0x60] sm:$0xff]
    %v68 = vld [vmem:[#allocation4 + $0x68] sm:$0xff]
    %v69 = vld [vmem:[#allocation4 + $0x70] sm:$0xff]
    %v70 = vld [vmem:[#allocation4 + $0x78] sm:$0xff]
    %v71 = vld [vmem:[#allocation4 + $0x80] sm:$0xff]
    %v72 = vld [vmem:[#allocation4 + $0x88] sm:$0xff]
    %v73 = vld [vmem:[#allocation4 + $0x90] sm:$0xff]
    %v74 = vld [vmem:[#allocation4 + $0x98] sm:$0xff]
    %v75 = vld [vmem:[#allocation4 + $0xa0] sm:$0xff]
    %v76 = vld [vmem:[#allocation4 + $0xa8] sm:$0xff]
    %v77 = vld [vmem:[#allocation4 + $0xb0] sm:$0xff]
    %v78 = vld [vmem:[#allocation4 + $0xb8] sm:$0xff]
    %v79 = vld [vmem:[#allocation4 + $0xc0] sm:$0xff]
    %v80 = vld [vmem:[#allocation4 + $0xc8] sm:$0xff]
    %v81 = vld [vmem:[#allocation4 + $0xd0] sm:$0xff]
    %v82 = vld [vmem:[#allocation4 + $0xd8] sm:$0xff]
    %v83 = vld [vmem:[#allocation4 + $0xe0] sm:$0xff]
    %v84 = vld [vmem:[#allocation4 + $0xe8] sm:$0xff]
    %v85 = vld [vmem:[#allocation4 + $0xf0] sm:$0xff]
    %v86 = vld [vmem:[#allocation4 + $0xf8] sm:$0xff]
    %v87 = vmul.f32 %v55, %v55
    %v88 = vmul.f32 %v56, %v56
    %v89 = vmul.f32 %v57, %v57
    %v90 = vmul.f32 %v58, %v58
    %v91 = vmul.f32 %v59, %v59
    %v92 = vmul.f32 %v60, %v60
    %v93 = vmul.f32 %v61, %v61
    %v94 = vmul.f32 %v62, %v62
    %v95 = vmul.f32 %v63, %v63
    %v96 = vmul.f32 %v64, %v64
    %v97 = vmul.f32 %v65, %v65
    %v98 = vmul.f32 %v66, %v66
    %v99 = vmul.f32 %v67, %v67
    %v100 = vmul.f32 %v68, %v68
    %v101 = vmul.f32 %v69, %v69
    %v102 = vmul.f32 %v70, %v70
    %v103 = vmul.f32 %v71, %v71
    %v104 = vmul.f32 %v72, %v72
    %v105 = vmul.f32 %v73, %v73
    %v106 = vmul.f32 %v74, %v74
    %v107 = vmul.f32 %v75, %v75
    %v108 = vmul.f32 %v76, %v76
    %v109 = vmul.f32 %v77, %v77
    %v110 = vmul.f32 %v78, %v78
    %v111 = vmul.f32 %v79, %v79
    %v112 = vmul.f32 %v80, %v80
    %v113 = vmul.f32 %v81, %v81
    %v114 = vmul.f32 %v82, %v82
    %v115 = vmul.f32 %v83, %v83
    %v116 = vmul.f32 %v84, %v84
    %v117 = vmul.f32 %v85, %v85
    %v118 = vmul.f32 %v86, %v86
    %119 = vadd.xlane.f32.xlu0 %v87
    %v120 = vpop.xlane.xlu0 %119
    %121 = vadd.xlane.f32.xlu0 %v88
    %v122 = vpop.xlane.xlu0 %121
    %123 = vadd.xlane.f32.xlu0 %v89
    %v124 = vpop.xlane.xlu0 %123
    %125 = vadd.xlane.f32.xlu0 %v90
    %v126 = vpop.xlane.xlu0 %125
    %127 = vadd.xlane.f32.xlu0 %v91
    %v128 = vpop.xlane.xlu0 %127
    %129 = vadd.xlane.f32.xlu0 %v92
    %v130 = vpop.xlane.xlu0 %129
    %131 = vadd.xlane.f32.xlu0 %v93
    %v132 = vpop.xlane.xlu0 %131
    %133 = vadd.xlane.f32.xlu0 %v94
    %v134 = vpop.xlane.xlu0 %133
    %135 = vadd.xlane.f32.xlu0 %v95
    %v136 = vpop.xlane.xlu0 %135
    %137 = vadd.xlane.f32.xlu0 %v96
    %v138 = vpop.xlane.xlu0 %137
    %139 = vadd.xlane.f32.xlu0 %v97
    %v140 = vpop.xlane.xlu0 %139
    %141 = vadd.xlane.f32.xlu0 %v98
    %v142 = vpop.xlane.xlu0 %141
    %143 = vadd.xlane.f32.xlu0 %v99
    %v144 = vpop.xlane.xlu0 %143
    %145 = vadd.xlane.f32.xlu0 %v100
    %v146 = vpop.xlane.xlu0 %145
    %147 = vadd.xlane.f32.xlu0 %v101
    %v148 = vpop.xlane.xlu0 %147
    %149 = vadd.xlane.f32.xlu0 %v102
    %v150 = vpop.xlane.xlu0 %149
    %151 = vadd.xlane.f32.xlu0 %v103
    %v152 = vpop.xlane.xlu0 %151
    %153 = vadd.xlane.f32.xlu0 %v104
    %v154 = vpop.xlane.xlu0 %153
    %155 = vadd.xlane.f32.xlu0 %v105
    %v156 = vpop.xlane.xlu0 %155
    %157 = vadd.xlane.f32.xlu0 %v106
    %v158 = vpop.xlane.xlu0 %157
    %159 = vadd.xlane.f32.xlu0 %v107
    %v160 = vpop.xlane.xlu0 %159
    %161 = vadd.xlane.f32.xlu0 %v108
    %v162 = vpop.xlane.xlu0 %161
    %163 = vadd.xlane.f32.xlu0 %v109
    %v164 = vpop.xlane.xlu0 %163
    %165 = vadd.xlane.f32.xlu0 %v110
    %v166 = vpop.xlane.xlu0 %165
    %167 = vadd.xlane.f32.xlu0 %v111
    %v168 = vpop.xlane.xlu0 %167
    %169 = vadd.xlane.f32.xlu0 %v112
    %v170 = vpop.xlane.xlu0 %169
    %171 = vadd.xlane.f32.xlu0 %v113
    %v172 = vpop.xlane.xlu0 %171
    %173 = vadd.xlane.f32.xlu0 %v114
    %v174 = vpop.xlane.xlu0 %173
    %175 = vadd.xlane.f32.xlu0 %v115
    %v176 = vpop.xlane.xlu0 %175
    %177 = vadd.xlane.f32.xlu0 %v116
    %v178 = vpop.xlane.xlu0 %177
    %179 = vadd.xlane.f32.xlu0 %v117
    %v180 = vpop.xlane.xlu0 %179
    %181 = vadd.xlane.f32.xlu0 %v118
    %v182 = vpop.xlane.xlu0 %181
    %v183 = vrsqrt.pop %v120
    %v184 = vmul.f32 %v120, %v183
    %vm185 = vcmp.eq.f32.partialorder %v120, inf
    %v186 = vsel %vm185, %v120, %v184
    %vm187 = vcmp.eq.f32.partialorder %v120, 0.0
    %v188 = vand.u32 %v120, 2147483648
    %v189 = vsel %vm187, %v188, %v186
    %v190 = vrsqrt.pop %v122
    %v191 = vmul.f32 %v122, %v190
    %vm192 = vcmp.eq.f32.partialorder %v122, inf
    %v193 = vsel %vm192, %v122, %v191
    %vm194 = vcmp.eq.f32.partialorder %v122, 0.0
    %v195 = vand.u32 %v122, 2147483648
    %v196 = vsel %vm194, %v195, %v193
    %v197 = vrsqrt.pop %v124
    %v198 = vmul.f32 %v124, %v197
    %vm199 = vcmp.eq.f32.partialorder %v124, inf
    %v200 = vsel %vm199, %v124, %v198
    %vm201 = vcmp.eq.f32.partialorder %v124, 0.0
    %v202 = vand.u32 %v124, 2147483648
    %v203 = vsel %vm201, %v202, %v200
    %v204 = vrsqrt.pop %v126
    %v205 = vmul.f32 %v126, %v204
    %vm206 = vcmp.eq.f32.partialorder %v126, inf
    %v207 = vsel %vm206, %v126, %v205
    %vm208 = vcmp.eq.f32.partialorder %v126, 0.0
    %v209 = vand.u32 %v126, 2147483648
    %v210 = vsel %vm208, %v209, %v207
    %v211 = vrsqrt.pop %v128
    %v212 = vmul.f32 %v128, %v211
    %vm213 = vcmp.eq.f32.partialorder %v128, inf
    %v214 = vsel %vm213, %v128, %v212
    %vm215 = vcmp.eq.f32.partialorder %v128, 0.0
    %v216 = vand.u32 %v128, 2147483648
    %v217 = vsel %vm215, %v216, %v214
    %v218 = vrsqrt.pop %v130
    %v219 = vmul.f32 %v130, %v218
    %vm220 = vcmp.eq.f32.partialorder %v130, inf
    %v221 = vsel %vm220, %v130, %v219
    %vm222 = vcmp.eq.f32.partialorder %v130, 0.0
    %v223 = vand.u32 %v130, 2147483648
    %v224 = vsel %vm222, %v223, %v221
    %v225 = vrsqrt.pop %v132
    %v226 = vmul.f32 %v132, %v225
    %vm227 = vcmp.eq.f32.partialorder %v132, inf
    %v228 = vsel %vm227, %v132, %v226
    %vm229 = vcmp.eq.f32.partialorder %v132, 0.0
    %v230 = vand.u32 %v132, 2147483648
    %v231 = vsel %vm229, %v230, %v228
    %v232 = vrsqrt.pop %v134
    %v233 = vmul.f32 %v134, %v232
    %vm234 = vcmp.eq.f32.partialorder %v134, inf
    %v235 = vsel %vm234, %v134, %v233
    %vm236 = vcmp.eq.f32.partialorder %v134, 0.0
    %v237 = vand.u32 %v134, 2147483648
    %v238 = vsel %vm236, %v237, %v235
    %v239 = vrsqrt.pop %v136
    %v240 = vmul.f32 %v136, %v239
    %vm241 = vcmp.eq.f32.partialorder %v136, inf
    %v242 = vsel %vm241, %v136, %v240
    %vm243 = vcmp.eq.f32.partialorder %v136, 0.0
    %v244 = vand.u32 %v136, 2147483648
    %v245 = vsel %vm243, %v244, %v242
    %v246 = vrsqrt.pop %v138
    %v247 = vmul.f32 %v138, %v246
    %vm248 = vcmp.eq.f32.partialorder %v138, inf
    %v249 = vsel %vm248, %v138, %v247
    %vm250 = vcmp.eq.f32.partialorder %v138, 0.0
    %v251 = vand.u32 %v138, 2147483648
    %v252 = vsel %vm250, %v251, %v249
    %v253 = vrsqrt.pop %v140
    %v254 = vmul.f32 %v140, %v253
    %vm255 = vcmp.eq.f32.partialorder %v140, inf
    %v256 = vsel %vm255, %v140, %v254
    %vm257 = vcmp.eq.f32.partialorder %v140, 0.0
    %v258 = vand.u32 %v140, 2147483648
    %v259 = vsel %vm257, %v258, %v256
    %v260 = vrsqrt.pop %v142
    %v261 = vmul.f32 %v142, %v260
    %vm262 = vcmp.eq.f32.partialorder %v142, inf
    %v263 = vsel %vm262, %v142, %v261
    %vm264 = vcmp.eq.f32.partialorder %v142, 0.0
    %v265 = vand.u32 %v142, 2147483648
    %v266 = vsel %vm264, %v265, %v263
    %v267 = vrsqrt.pop %v144
    %v268 = vmul.f32 %v144, %v267
    %vm269 = vcmp.eq.f32.partialorder %v144, inf
    %v270 = vsel %vm269, %v144, %v268
    %vm271 = vcmp.eq.f32.partialorder %v144, 0.0
    %v272 = vand.u32 %v144, 2147483648
    %v273 = vsel %vm271, %v272, %v270
    %v274 = vrsqrt.pop %v146
    %v275 = vmul.f32 %v146, %v274
    %vm276 = vcmp.eq.f32.partialorder %v146, inf
    %v277 = vsel %vm276, %v146, %v275
    %vm278 = vcmp.eq.f32.partialorder %v146, 0.0
    %v279 = vand.u32 %v146, 2147483648
    %v280 = vsel %vm278, %v279, %v277
    %v281 = vrsqrt.pop %v148
    %v282 = vmul.f32 %v148, %v281
    %vm283 = vcmp.eq.f32.partialorder %v148, inf
    %v284 = vsel %vm283, %v148, %v282
    %vm285 = vcmp.eq.f32.partialorder %v148, 0.0
    %v286 = vand.u32 %v148, 2147483648
    %v287 = vsel %vm285, %v286, %v284
    %v288 = vrsqrt.pop %v150
    %v289 = vmul.f32 %v150, %v288
    %vm290 = vcmp.eq.f32.partialorder %v150, inf
    %v291 = vsel %vm290, %v150, %v289
    %vm292 = vcmp.eq.f32.partialorder %v150, 0.0
    %v293 = vand.u32 %v150, 2147483648
    %v294 = vsel %vm292, %v293, %v291
    %v295 = vrsqrt.pop %v152
    %v296 = vmul.f32 %v152, %v295
    %vm297 = vcmp.eq.f32.partialorder %v152, inf
    %v298 = vsel %vm297, %v152, %v296
    %vm299 = vcmp.eq.f32.partialorder %v152, 0.0
    %v300 = vand.u32 %v152, 2147483648
    %v301 = vsel %vm299, %v300, %v298
    %v302 = vrsqrt.pop %v154
    %v303 = vmul.f32 %v154, %v302
    %vm304 = vcmp.eq.f32.partialorder %v154, inf
    %v305 = vsel %vm304, %v154, %v303
    %vm306 = vcmp.eq.f32.partialorder %v154, 0.0
    %v307 = vand.u32 %v154, 2147483648
    %v308 = vsel %vm306, %v307, %v305
    %v309 = vrsqrt.pop %v156
    %v310 = vmul.f32 %v156, %v309
    %vm311 = vcmp.eq.f32.partialorder %v156, inf
    %v312 = vsel %vm311, %v156, %v310
    %vm313 = vcmp.eq.f32.partialorder %v156, 0.0
    %v314 = vand.u32 %v156, 2147483648
    %v315 = vsel %vm313, %v314, %v312
    %v316 = vrsqrt.pop %v158
    %v317 = vmul.f32 %v158, %v316
    %vm318 = vcmp.eq.f32.partialorder %v158, inf
    %v319 = vsel %vm318, %v158, %v317
    %vm320 = vcmp.eq.f32.partialorder %v158, 0.0
    %v321 = vand.u32 %v158, 2147483648
    %v322 = vsel %vm320, %v321, %v319
    %v323 = vrsqrt.pop %v160
    %v324 = vmul.f32 %v160, %v323
    %vm325 = vcmp.eq.f32.partialorder %v160, inf
    %v326 = vsel %vm325, %v160, %v324
    %vm327 = vcmp.eq.f32.partialorder %v160, 0.0
    %v328 = vand.u32 %v160, 2147483648
    %v329 = vsel %vm327, %v328, %v326
    %v330 = vrsqrt.pop %v162
    %v331 = vmul.f32 %v162, %v330
    %vm332 = vcmp.eq.f32.partialorder %v162, inf
    %v333 = vsel %vm332, %v162, %v331
    %vm334 = vcmp.eq.f32.partialorder %v162, 0.0
    %v335 = vand.u32 %v162, 2147483648
    %v336 = vsel %vm334, %v335, %v333
    %v337 = vrsqrt.pop %v164
    %v338 = vmul.f32 %v164, %v337
    %vm339 = vcmp.eq.f32.partialorder %v164, inf
    %v340 = vsel %vm339, %v164, %v338
    %vm341 = vcmp.eq.f32.partialorder %v164, 0.0
    %v342 = vand.u32 %v164, 2147483648
    %v343 = vsel %vm341, %v342, %v340
    %v344 = vrsqrt.pop %v166
    %v345 = vmul.f32 %v166, %v344
    %vm346 = vcmp.eq.f32.partialorder %v166, inf
    %v347 = vsel %vm346, %v166, %v345
    %vm348 = vcmp.eq.f32.partialorder %v166, 0.0
    %v349 = vand.u32 %v166, 2147483648
    %v350 = vsel %vm348, %v349, %v347
    %v351 = vrsqrt.pop %v168
    %v352 = vmul.f32 %v168, %v351
    %vm353 = vcmp.eq.f32.partialorder %v168, inf
    %v354 = vsel %vm353, %v168, %v352
    %vm355 = vcmp.eq.f32.partialorder %v168, 0.0
    %v356 = vand.u32 %v168, 2147483648
    %v357 = vsel %vm355, %v356, %v354
    %v358 = vrsqrt.pop %v170
    %v359 = vmul.f32 %v170, %v358
    %vm360 = vcmp.eq.f32.partialorder %v170, inf
    %v361 = vsel %vm360, %v170, %v359
    %vm362 = vcmp.eq.f32.partialorder %v170, 0.0
    %v363 = vand.u32 %v170, 2147483648
    %v364 = vsel %vm362, %v363, %v361
    %v365 = vrsqrt.pop %v172
    %v366 = vmul.f32 %v172, %v365
    %vm367 = vcmp.eq.f32.partialorder %v172, inf
    %v368 = vsel %vm367, %v172, %v366
    %vm369 = vcmp.eq.f32.partialorder %v172, 0.0
    %v370 = vand.u32 %v172, 2147483648
    %v371 = vsel %vm369, %v370, %v368
    %v372 = vrsqrt.pop %v174
    %v373 = vmul.f32 %v174, %v372
    %vm374 = vcmp.eq.f32.partialorder %v174, inf
    %v375 = vsel %vm374, %v174, %v373
    %vm376 = vcmp.eq.f32.partialorder %v174, 0.0
    %v377 = vand.u32 %v174, 2147483648
    %v378 = vsel %vm376, %v377, %v375
    %v379 = vrsqrt.pop %v176
    %v380 = vmul.f32 %v176, %v379
    %vm381 = vcmp.eq.f32.partialorder %v176, inf
    %v382 = vsel %vm381, %v176, %v380
    %vm383 = vcmp.eq.f32.partialorder %v176, 0.0
    %v384 = vand.u32 %v176, 2147483648
    %v385 = vsel %vm383, %v384, %v382
    %v386 = vrsqrt.pop %v178
    %v387 = vmul.f32 %v178, %v386
    %vm388 = vcmp.eq.f32.partialorder %v178, inf
    %v389 = vsel %vm388, %v178, %v387
    %vm390 = vcmp.eq.f32.partialorder %v178, 0.0
    %v391 = vand.u32 %v178, 2147483648
    %v392 = vsel %vm390, %v391, %v389
    %v393 = vrsqrt.pop %v180
    %v394 = vmul.f32 %v180, %v393
    %vm395 = vcmp.eq.f32.partialorder %v180, inf
    %v396 = vsel %vm395, %v180, %v394
    %vm397 = vcmp.eq.f32.partialorder %v180, 0.0
    %v398 = vand.u32 %v180, 2147483648
    %v399 = vsel %vm397, %v398, %v396
    %v400 = vrsqrt.pop %v182
    %v401 = vmul.f32 %v182, %v400
    %vm402 = vcmp.eq.f32.partialorder %v182, inf
    %v403 = vsel %vm402, %v182, %v401
    %vm404 = vcmp.eq.f32.partialorder %v182, 0.0
    %v405 = vand.u32 %v182, 2147483648
    %v406 = vsel %vm404, %v405, %v403
    %v407 = vmax.f32 %v189, 1e-12
    %v408 = vmax.f32 %v196, 1e-12
    %v409 = vmax.f32 %v203, 1e-12
    %v410 = vmax.f32 %v210, 1e-12
    %v411 = vmax.f32 %v217, 1e-12
    %v412 = vmax.f32 %v224, 1e-12
    %v413 = vmax.f32 %v231, 1e-12
    %v414 = vmax.f32 %v238, 1e-12
    %v415 = vmax.f32 %v245, 1e-12
    %v416 = vmax.f32 %v252, 1e-12
    %v417 = vmax.f32 %v259, 1e-12
    %v418 = vmax.f32 %v266, 1e-12
    %v419 = vmax.f32 %v273, 1e-12
    %v420 = vmax.f32 %v280, 1e-12
    %v421 = vmax.f32 %v287, 1e-12
    %v422 = vmax.f32 %v294, 1e-12
    %v423 = vmax.f32 %v301, 1e-12
    %v424 = vmax.f32 %v308, 1e-12
    %v425 = vmax.f32 %v315, 1e-12
    %v426 = vmax.f32 %v322, 1e-12
    %v427 = vmax.f32 %v329, 1e-12
    %v428 = vmax.f32 %v336, 1e-12
    %v429 = vmax.f32 %v343, 1e-12
    %v430 = vmax.f32 %v350, 1e-12
    %v431 = vmax.f32 %v357, 1e-12
    %v432 = vmax.f32 %v364, 1e-12
    %v433 = vmax.f32 %v371, 1e-12
    %v434 = vmax.f32 %v378, 1e-12
    %v435 = vmax.f32 %v385, 1e-12
    %v436 = vmax.f32 %v392, 1e-12
    %v437 = vmax.f32 %v399, 1e-12
    %v438 = vmax.f32 %v406, 1e-12
    %v439 = vrcp.pop %v407
    %v440 = vmul.f32 %v55, %v439
    %v441 = vrcp.pop %v408
    %v442 = vmul.f32 %v56, %v441
    %v443 = vrcp.pop %v409
    %v444 = vmul.f32 %v57, %v443
    %v445 = vrcp.pop %v410
    %v446 = vmul.f32 %v58, %v445
    %v447 = vrcp.pop %v411
    %v448 = vmul.f32 %v59, %v447
    %v449 = vrcp.pop %v412
    %v450 = vmul.f32 %v60, %v449
    %v451 = vrcp.pop %v413
    %v452 = vmul.f32 %v61, %v451
    %v453 = vrcp.pop %v414
    %v454 = vmul.f32 %v62, %v453
    %v455 = vrcp.pop %v415
    %v456 = vmul.f32 %v63, %v455
    %v457 = vrcp.pop %v416
    %v458 = vmul.f32 %v64, %v457
    %v459 = vrcp.pop %v417
    %v460 = vmul.f32 %v65, %v459
    %v461 = vrcp.pop %v418
    %v462 = vmul.f32 %v66, %v461
    %v463 = vrcp.pop %v419
    %v464 = vmul.f32 %v67, %v463
    %v465 = vrcp.pop %v420
    %v466 = vmul.f32 %v68, %v465
    %v467 = vrcp.pop %v421
    %v468 = vmul.f32 %v69, %v467
    %v469 = vrcp.pop %v422
    %v470 = vmul.f32 %v70, %v469
    %v471 = vrcp.pop %v423
    %v472 = vmul.f32 %v71, %v471
    %v473 = vrcp.pop %v424
    %v474 = vmul.f32 %v72, %v473
    %v475 = vrcp.pop %v425
    %v476 = vmul.f32 %v73, %v475
    %v477 = vrcp.pop %v426
    %v478 = vmul.f32 %v74, %v477
    %v479 = vrcp.pop %v427
    %v480 = vmul.f32 %v75, %v479
    %v481 = vrcp.pop %v428
    %v482 = vmul.f32 %v76, %v481
    %v483 = vrcp.pop %v429
    %v484 = vmul.f32 %v77, %v483
    %v485 = vrcp.pop %v430
    %v486 = vmul.f32 %v78, %v485
    %v487 = vrcp.pop %v431
    %v488 = vmul.f32 %v79, %v487
    %v489 = vrcp.pop %v432
    %v490 = vmul.f32 %v80, %v489
    %v491 = vrcp.pop %v433
    %v492 = vmul.f32 %v81, %v491
    %v493 = vrcp.pop %v434
    %v494 = vmul.f32 %v82, %v493
    %v495 = vrcp.pop %v435
    %v496 = vmul.f32 %v83, %v495
    %v497 = vrcp.pop %v436
    %v498 = vmul.f32 %v84, %v497
    %v499 = vrcp.pop %v437
    %v500 = vmul.f32 %v85, %v499
    %v501 = vrcp.pop %v438
    %v502 = vmul.f32 %v86, %v501
    %v503 = vpack.c.bf16 %v442, %v440
    %v504 = vpack.c.bf16 %v446, %v444
    %v505 = vpack.c.bf16 %v450, %v448
    %v506 = vpack.c.bf16 %v454, %v452
    %v507 = vpack.c.bf16 %v458, %v456
    %v508 = vpack.c.bf16 %v462, %v460
    %v509 = vpack.c.bf16 %v466, %v464
    %v510 = vpack.c.bf16 %v470, %v468
    %v511 = vpack.c.bf16 %v474, %v472
    %v512 = vpack.c.bf16 %v478, %v476
    %v513 = vpack.c.bf16 %v482, %v480
    %v514 = vpack.c.bf16 %v486, %v484
    %v515 = vpack.c.bf16 %v490, %v488
    %v516 = vpack.c.bf16 %v494, %v492
    %v517 = vpack.c.bf16 %v498, %v496
    %v518 = vpack.c.bf16 %v502, %v500
    %v519 = vld [vmem:[#allocation2] sm:$0xf]
    %520 = vmatprep.subr.bf16.mxu0 0
    %521 = vmatpush1.bf16.xpose.msra.mxu0 %v510
    %522 = vmatprep.subr.bf16.mxu0 0
    %523 = vmatpush1.bf16.xpose.msra.mxu0 %v509
    %524 = vmatprep.subr.bf16.mxu0 0
    %525 = vmatpush1.bf16.xpose.msra.mxu0 %v508
    %526 = vmatprep.subr.bf16.mxu0 0
    %527 = vmatpush1.bf16.xpose.msra.mxu0 %v507
    %528 = vmatprep.subr.bf16.mxu0 0
    %529 = vmatpush1.bf16.xpose.msra.mxu0 %v506
    %530 = vmatprep.subr.bf16.mxu0 0
    %531 = vmatpush1.bf16.xpose.msra.mxu0 %v505
    %532 = vmatprep.subr.bf16.mxu0 0
    %533 = vmatpush1.bf16.xpose.msra.mxu0 %v504
    %534 = vmatprep.subr.bf16.mxu0 0
    %535 = vmatpush1.bf16.xpose.msra.mxu0 %v503
    %536 = vmatprep.subr.bf16.mxu0 0
    %537 = vmatpush2.bf16.xpose.msra.mxu0 %v518
    %538 = vmatprep.subr.bf16.mxu0 0
    %539 = vmatpush2.bf16.xpose.msra.mxu0 %v517
    %540 = vmatprep.subr.bf16.mxu0 0
    %541 = vmatpush2.bf16.xpose.msra.mxu0 %v516
    %542 = vmatprep.subr.bf16.mxu0 0
    %543 = vmatpush2.bf16.xpose.msra.mxu0 %v515
    %544 = vmatprep.subr.bf16.mxu0 0
    %545 = vmatpush2.bf16.xpose.msra.mxu0 %v514
    %546 = vmatprep.subr.bf16.mxu0 0
    %547 = vmatpush2.bf16.xpose.msra.mxu0 %v513
    %548 = vmatprep.subr.bf16.mxu0 0
    %549 = vmatpush2.bf16.xpose.msra.mxu0 %v512
    %550 = vmatprep.subr.bf16.mxu0 0
    %551 = vmatpush2.bf16.xpose.msra.mxu0 %v511
    %552 = vmatprep.mubr.bf16.mxu0 0
    %553 = vmatmul.mubr.bf16.gmra.mxu0 %v519
    %v554 = vpop.f32.mrf.mxu0
    %v555 = vadd.f32 0.0, %v554
    %v556 = vpop.f32.mrf.mxu0
    %v557 = vadd.f32 0.0, %v556
    %v558 = vpop.f32.mrf.mxu0
    %v559 = vpop.f32.mrf.mxu0
    %560 = vdwg.mxu0
    %v561 = vpack.c.bf16 %v555, %v555
    %v562 = vpack.c.bf16 %v557, %v557
    %v563 = vld [vmem:[#allocation3] sm:$0xff]
    %564 = vmatprep.subr.bf16.mxu0 0
    %565 = vmatpush1.bf16.xpose.msra.mxu0 0
    %566 = vmatprep.subr.bf16.mxu0 0
    %567 = vmatpush1.bf16.xpose.msra.mxu0 0
    %568 = vmatprep.subr.bf16.mxu0 0
    %569 = vmatpush1.bf16.xpose.msra.mxu0 0
    %570 = vmatprep.subr.bf16.mxu0 0
    %571 = vmatpush1.bf16.xpose.msra.mxu0 0
    %572 = vmatprep.subr.bf16.mxu0 0
    %573 = vmatpush1.bf16.xpose.msra.mxu0 0
    %574 = vmatprep.subr.bf16.mxu0 0
    %575 = vmatpush1.bf16.xpose.msra.mxu0 0
    %576 = vmatprep.subr.bf16.mxu0 0
    %577 = vmatpush1.bf16.xpose.msra.mxu0 0
    %578 = vmatprep.subr.bf16.mxu0 %v562
    %579 = vmatpush1.bf16.xpose.msra.mxu0 %v561
    %580 = vmatprep.subr.bf16.mxu0 0
    %581 = vmatpush2.bf16.xpose.msra.mxu0 0
    %582 = vmatprep.subr.bf16.mxu0 0
    %583 = vmatpush2.bf16.xpose.msra.mxu0 0
    %584 = vmatprep.subr.bf16.mxu0 0
    %585 = vmatpush2.bf16.xpose.msra.mxu0 0
    %586 = vmatprep.subr.bf16.mxu0 0
    %587 = vmatpush2.bf16.xpose.msra.mxu0 0
    %588 = vmatprep.subr.bf16.mxu0 0
    %589 = vmatpush2.bf16.xpose.msra.mxu0 0
    %590 = vmatprep.subr.bf16.mxu0 0
    %591 = vmatpush2.bf16.xpose.msra.mxu0 0
    %592 = vmatprep.subr.bf16.mxu0 0
    %593 = vmatpush2.bf16.xpose.msra.mxu0 0
    %594 = vmatprep.subr.bf16.mxu0 0
    %595 = vmatpush2.bf16.xpose.msra.mxu0 0
    %596 = vmatprep.mubr.bf16.mxu0 %v562
    %597 = vmatmul.mubr.bf16.gmra.mxu0 %v561
    %v598 = vpop.f32.mrf.mxu0
    %v599 = vadd.f32 0.0, %v598
    %v600 = vpop.f32.mrf.mxu0
    %v601 = vpop.f32.mrf.mxu0
    %v602 = vpop.f32.mrf.mxu0
    %603 = vdwg.mxu0
    %v604 = vadd.f32 %v563, %v599
    %vm605 = vcmask 64512
    %606 = vst.msk [vmem:[#allocation3] sm:$0xff] %vm605, %v604
    // Predicated region
    $region26: #{tpu_custom_call.1} parent=1 // pred_check
      %p607 = pneg %p33
    $region27: #{tpu_custom_call.1} parent=1 // pred_check_branch
      %609 = sbr.rel (%p607) target = $region29
    $region28: #{tpu_custom_call.1} parent=1 // pred_region
      %v610 = vld [vmem:[#allocation3] sm:$0xff]
      %v611 = vld [vmem:[%s2] sm:$0xff]
      %v612 = vld [vmem:[%s3] sm:$0x1]
      %613 = vset.pattern.permute.xlu0 0
      %614 = vperm.xlu0 %613, %v611
      %v615 = vpop.permute.xlu0 %614
      %v616 = vlaneseq
      %v617 = vshrl.u32 %v616, 7
      %v618 = vsub.s32 0, %v617
      %v619 = vrot.slane %v612, %v618
      %vm620 = vcmp.eq.s32.totalorder %v615, %v619
      %v621 = vlaneseq
      %v622 = vshrl.u32 %v621, 7
      %v623 = vlaneseq
      %v624 = vand.u32 %v623, 127
      %vm625 = vcmp.gt.s32.totalorder %v624, %v622
      %vm626 = vcmp.lt.s32.totalorder %v622, 8
      %vm627 = vcmp.lt.s32.totalorder %v624, 8
      %vm628 = vmand %vm626, %vm627
      %vm629 = vmand %vm625, %vm628
      %vm630 = vmand %vm620, %vm629
      %vm631 = vmxor %vm620, 1
      %vm632 = vmand %vm631, %vm629
      %v633 = vsub.f32 0.0, %v610
      %v634 = vadd.f32 %v633, 1.0
      %v635 = vadd.f32 %v634, 0.25
      %v636 = vmax.f32 %v635, 0.0
      %v637 = vadd.f32 %v610, 0.25
      %v638 = vmax.f32 %v637, 0.0
      %v639 = vsub.f32 0.0, %v636
      %v640 = vsub.f32 %v610, 0.75
      %v641 = vmul.f32 %v639, %v640
      %v642 = vmul.f32 %v641, 64.0
      %v643 = vsub.f32 %v610, 0.25
      %v644 = vmul.f32 %v638, %v643
      %v645 = vmul.f32 %v644, 64.0
      %v646 = vsel %vm630, %v642, -inf
      %v647 = vsel %vm632, %v645, -inf
      %v648 = vsel %vm605, %v647, -inf
      %649 = vmax.xlane.f32.xlu0 %v648
      %v650 = vpop.xlane.xlu0 %649
      %v651 = vrot.slane %v650, 4
      %v652 = vmax.f32 %v650, %v651
      %v653 = vrot.slane %v652, 2
      %v654 = vmax.f32 %v652, %v653
      %v655 = vrot.slane %v654, 1
      %v656 = vmax.f32 %v654, %v655
      %s657 = vtos %v656
      %p658 = scmp.eq.f32.partialorder %s657, -inf
      %s659 = scalar_select %p658, 0.0, %s657
      %v660 = vstv %s659
      %v661 = vsub.f32 %v647, %v660
      %v662 = vmul.f32 %v661, 1.442695
      %v663 = vpow.pop %v662
      %v664 = vsel %vm605, %v663, 0.0
      %665 = vadd.xlane.f32.xlu0 %v664
      %v666 = vpop.xlane.xlu0 %665
      %vm667 = vcmask 7168
      %v668 = vsel %vm667, %v666, 0.0
      %669 = vadd.xlane.f32.xlu0 %v668
      %v670 = vpop.xlane.xlu0 %669
      %v671 = vrot.slane %v670, 4
      %v672 = vadd.f32 %v670, %v671
      %v673 = vrot.slane %v672, 2
      %v674 = vadd.f32 %v672, %v673
      %v675 = vrot.slane %v674, 1
      %v676 = vadd.f32 %v674, %v675
      %s677 = vtos %v676
      %v678 = vstv %s677
      %v679 = vlog2.pop %v678
      %v680 = vmul.f32 %v679, 0.6931472
      %s681 = vtos %v680
      %s682 = sadd.f32 %s681, %s659
      %s683 = scalar_select %p658, -inf, %s682
      %v684 = vsel %vm605, %v646, -inf
      %685 = vmax.xlane.f32.xlu0 %v684
      %v686 = vpop.xlane.xlu0 %685
      %v687 = vrot.slane %v686, 4
      %v688 = vmax.f32 %v686, %v687
      %v689 = vrot.slane %v688, 2
      %v690 = vmax.f32 %v688, %v689
      %v691 = vrot.slane %v690, 1
      %v692 = vmax.f32 %v690, %v691
      %s693 = vtos %v692
      %p694 = scmp.eq.f32.partialorder %s693, -inf
      %s695 = scalar_select %p694, 0.0, %s693
      %v696 = vstv %s695
      %v697 = vsub.f32 %v646, %v696
      %v698 = vmul.f32 %v697, 1.442695
      %v699 = vpow.pop %v698
      %v700 = vsel %vm605, %v699, 0.0
      %701 = vadd.xlane.f32.xlu0 %v700
      %v702 = vpop.xlane.xlu0 %701
      %v703 = vsel %vm667, %v702, 0.0
      %704 = vadd.xlane.f32.xlu0 %v703
      %v705 = vpop.xlane.xlu0 %704
      %v706 = vrot.slane %v705, 4
      %v707 = vadd.f32 %v705, %v706
      %v708 = vrot.slane %v707, 2
      %v709 = vadd.f32 %v707, %v708
      %v710 = vrot.slane %v709, 1
      %v711 = vadd.f32 %v709, %v710
      %s712 = vtos %v711
      %v713 = vstv %s712
      %v714 = vlog2.pop %v713
      %v715 = vmul.f32 %v714, 0.6931472
      %s716 = vtos %v715
      %s717 = sadd.f32 %s716, %s695
      %s718 = scalar_select %p694, -inf, %s717
      %s719 = sadd.f32 %s683, %s718
      %s720 = smax.f32 %s719, 0.0
      %s721 = sand.u32 2147483647, %s719
      %s722 = ssub.f32 0.0, %s721
      %v723 = vstv %s722
      %v724 = vmul.f32 %v723, 1.442695
      %v725 = vpow.pop %v724
      %s726 = vtos %v725
      %v727 = vstv %s726
      %v728 = vadd.f32 %v727, 1.0
      %v729 = vlog2.pop %v728
      %v730 = vmul.f32 %v729, 0.6931472
      %v731 = vmul.f32 -0.5, %v727
      %v732 = vadd.f32 %v731, 1.0
      %v733 = vmul.f32 %v732, %v727
      %v734 = vand.u32 2147483647, %v727
      %vm735 = vcmp.lt.f32.partialorder %v734, 0.0004427343
      %v736 = vsel %vm735, %v733, %v730
      %s737 = vtos %v736
      %s738 = sadd.f32 %s720, %s737
      %s739 = scalar_lea.smem [#allocation7], 0
      %740 = sst [smem:[%s739]] %s738
    $region29: #{tpu_custom_call.1} parent=1 // pred_fallthru
      _
    // Predicated region
    $region30: #{tpu_custom_call.1} parent=1 // pred_check
      _
    $region31: #{tpu_custom_call.1} parent=1 // pred_check_branch
      %742 = sbr.rel (0) target = $region33
    $region32: #{tpu_custom_call.1} parent=1 // pred_region
      %s744 = ssub.s32 16, 16
      %745 = vsyncadd [#allocation6], %s744
      %748 = dma.smem_to_hbm [#allocation7], 16, %s4, [#allocation6]
    $region33: #{tpu_custom_call.1} parent=1 // pred_fallthru
      _
    // Predicated region
    $region34: #{tpu_custom_call.1} parent=1 // pred_check
      _
    $region35: #{tpu_custom_call.1} parent=1 // pred_check_branch
      %750 = sbr.rel (0) target = $region37
    $region36: #{tpu_custom_call.1} parent=1 // pred_region
      %751 = dma.done [#allocation6], 16
    $region37: #{tpu_custom_call.1} parent=1 // pred_fallthru
      _
    %752 = sfence
    %753 = vsyncpa [#allocation5], 1
    %754 = vsyncpa [#allocation6], 1

</llo_original>
